<compile_context>
chip_gen: v5e
topology: v5e:2x2
jax: 0.10.0
libtpu: 0.0.40
codegen_flags: <defaults>
</compile_context>

<pallas_src>
import functools

import jax
import jax.numpy as jnp
from jax.experimental import pallas as pl
from jax.experimental.pallas import tpu as pltpu


def _round_up(n, m):
    return ((n + m - 1) // m) * m


def _silu(y):
    # SiLU(y) = y * sigmoid(y) = y / (1 + exp(-y)).
    # The reciprocal runs on the EUP (approx=True) and one Newton step on the
    # VPU restores ~f32 accuracy.  The exp argument is clamped so y << 0 never
    # produces inf (which the Newton step would turn into NaN); silu(y) is
    # ~0 there anyway.
    d = 1.0 + jnp.exp(jnp.minimum(-y, 80.0))
    r = pl.reciprocal(d, approx=True)
    r = r * (2.0 - d * r)                       # one Newton refinement
    return y * r


def _coordconv_kernel_vpu(x_ref, coord_ref, w_ref, b_ref, o_ref, *, cin, bt):
    # x_ref:     (bt, Cin,  TILE_P)   input pixels, channels-major
    # coord_ref: (2,        TILE_P)   [xx; yy] rows for this pixel tile
    # w_ref:     (Cout, Cin + 2)      1x1 conv weights with BN scale folded in
    # b_ref:     (Cout, 1)            folded BN bias
    # o_ref:     (bt, Cout, TILE_P)
    w = w_ref[...]
    coords = coord_ref[...].astype(jnp.float32)
    # coordinate + bias contribution is identical for every image in the block
    base = (w[:, cin:cin + 1] * coords[0:1, :]
            + w[:, cin + 1:cin + 2] * coords[1:2, :]
            + b_ref[...])
    for bi in range(bt):                        # static, unrolled over batch
        x = x_ref[bi].astype(jnp.float32)       # (Cin, TILE_P)
        y = base
        for c in range(cin):                    # (Cout,1)x(1,TILE_P) VPU FMAs
            y = y + w[:, c:c + 1] * x[c:c + 1, :]
        o_ref[bi] = _silu(y).astype(o_ref.dtype)


def _coordconv_kernel_mxu(x_ref, coord_ref, w_ref, b_ref, o_ref, *, cin, bt):
    # Same contract as the VPU kernel; used when cin is large enough that the
    # VPU FMA chain would exceed the HBM roofline.  Channels are already on
    # sublanes and pixels on lanes, which is the MXU feed layout.
    w = w_ref[...]
    coords = coord_ref[...].astype(jnp.float32)
    base = (w[:, cin:cin + 1] * coords[0:1, :]
            + w[:, cin + 1:cin + 2] * coords[1:2, :]
            + b_ref[...])
    for bi in range(bt):
        x = x_ref[bi].astype(jnp.float32)       # (Cin, TILE_P)
        y = jnp.dot(w[:, :cin], x, preferred_element_type=jnp.float32) + base
        o_ref[bi] = _silu(y).astype(o_ref.dtype)


def coordconv_forward(x_nchw, w_conv, bn_gamma, bn_beta, bn_mean, bn_var,
                      *, eps=1e-3, tile_p=65536):
    """CoordConv forward (with_r=False).

    x_nchw: (B, C, H, W); w_conv: (Cout, C+2, 1, 1); BN params: (Cout,).
    eps defaults to 1e-3, matching ultralytics Conv's BatchNorm2d(eps=0.001).
    """
    B, C, H, W = x_nchw.shape
    Cout = w_conv.shape[0]
    Cin2 = C + 2
    assert w_conv.shape[1] == Cin2, "with_r=True is not supported"
    HW = H * W

    # ---- fold BN (eval mode) into the 1x1 conv weights / bias ----
    scale = (bn_gamma / jnp.sqrt(bn_var + eps)).astype(jnp.float32)           # (Cout,)
    w_eff = w_conv.reshape(Cout, Cin2).astype(jnp.float32) * scale[:, None]   # (Cout, Cin2)
    b_eff = (bn_beta.astype(jnp.float32)
             - bn_mean.astype(jnp.float32) * scale).reshape(Cout, 1)          # (Cout, 1)

    # ---- tiny per-pixel coordinate table (2, H*W), shared by all images ----
    # xx varies along H (normalized by H-1), yy along W (normalized by W-1),
    # channel order [x..., xx, yy] matching AddCoords' concat.
    # max(dim-1, 1) guards H==1 / W==1 (PyTorch would produce inf/nan there).
    xx = (jnp.arange(H, dtype=jnp.float32) / max(H - 1, 1)) * 2.0 - 1.0
    yy = (jnp.arange(W, dtype=jnp.float32) / max(W - 1, 1)) * 2.0 - 1.0
    coords = jnp.stack(
        [jnp.broadcast_to(xx[:, None], (H, W)).reshape(HW),
         jnp.broadcast_to(yy[None, :], (H, W)).reshape(HW)], axis=0)          # (2, HW)

    # ---- free reshape: NCHW -> (B, C, H*W); pixels land on the lane axis ----
    x3 = x_nchw.reshape(B, C, HW)

    # ---- tile / batch-block selection (VMEM-budgeted, v7x-safe) ------------
    # Double-buffered in/out blocks cost per pixel (sublane dims pad to 8):
    #   2 * 4B * (pad8(C)*bt + pad8(2) + pad8(Cout)*bt)
    # Keep that under ~24 MiB so that together with Mosaic-materialized
    # elementwise intermediates we stay well inside v7x's 64 MiB VMEM.
    blocks_budget = 24 * 1024 * 1024
    per_img = 4 * (_round_up(C, 8) + _round_up(Cout, 8))   # bytes / pixel / image
    shared = 4 * _round_up(2, 8)                           # coord rows, bytes / pixel

    def buffered_bytes(bt_, tp_):
        return 2 * tp_ * (bt_ * per_img + shared)

    tile_p = max(128, (int(tile_p) // 128) * 128)          # lane-aligned
    tile_p = min(tile_p, _round_up(HW, 128))               # no bigger than the map
    max_tp = max(128, (blocks_budget // (2 * (per_img + shared)) // 128) * 128)
    tile_p = min(tile_p, max_tp)

    # Small feature maps: pack several images per grid step so the ~0.35us
    # per-step overhead is amortized over a healthy amount of HBM traffic.
    target_pixels = 65536
    bt = 1
    if B > 1 and tile_p < target_pixels:
        bt = min(B, max(1, target_pixels // tile_p))
        while bt > 1 and buffered_bytes(bt, tile_p) > blocks_budget:
            bt -= 1
        while B % bt:                                       # exact batch blocks only
            bt -= 1

    grid = (pl.cdiv(HW, tile_p), B // bt)   # batch axis fastest: coord/weight
                                            # blocks are not re-fetched per image

    kernel = _coordconv_kernel_mxu if C >= 16 else _coordconv_kernel_vpu

    out3 = pl.pallas_call(
        functools.partial(kernel, cin=C, bt=bt),
        out_shape=jax.ShapeDtypeStruct((B, Cout, HW), x_nchw.dtype),
        grid=grid,
        in_specs=[
            pl.BlockSpec((bt, C, tile_p), lambda p, b: (b, 0, p)),
            pl.BlockSpec((2, tile_p), lambda p, b: (0, p)),
            pl.BlockSpec((Cout, Cin2), lambda p, b: (0, 0)),
            pl.BlockSpec((Cout, 1), lambda p, b: (0, 0)),
        ],
        out_specs=pl.BlockSpec((bt, Cout, tile_p), lambda p, b: (b, 0, p)),
        compiler_params=pltpu.CompilerParams(
            # Both grid axes are independent -> let v7x's two TensorCores
            # split either one.  Explicit VMEM limit: above the 32 MiB scoped
            # default, below v7x's 64 MiB physical VMEM.
            dimension_semantics=("parallel", "parallel"),
            vmem_limit_bytes=56 * 1024 * 1024,
        ),
    )(x3, coords, w_eff, b_eff)

    return out3.reshape(B, Cout, H, W)


def _reference(x_nchw, w_conv, bn_gamma, bn_beta, bn_mean, bn_var, eps=1e-3):
    """Pure-JAX reference of the CoordConv forward pass (with_r=False)."""
    B, C, H, W = x_nchw.shape
    Cout = w_conv.shape[0]
    xx = (jnp.arange(H, dtype=jnp.float32) / (H - 1)) * 2.0 - 1.0
    yy = (jnp.arange(W, dtype=jnp.float32) / (W - 1)) * 2.0 - 1.0
    xx_b = jnp.broadcast_to(xx[None, None, :, None], (B, 1, H, W))
    yy_b = jnp.broadcast_to(yy[None, None, None, :], (B, 1, H, W))
    x_aug = jnp.concatenate([x_nchw, xx_b, yy_b], axis=1)          # (B, C+2, H, W)
    w = w_conv.reshape(Cout, C + 2)                                 # 1x1 conv
    y = jnp.einsum('bchw,oc->bohw', x_aug, w)
    scale = bn_gamma / jnp.sqrt(bn_var + eps)
    bias = bn_beta - bn_mean * scale
    y = y * scale[None, :, None, None] + bias[None, :, None, None]
    return y * jax.nn.sigmoid(y)


if __name__ == "__main__":
    key = jax.random.PRNGKey(0)
    k_x, k_w, k_g, k_b, k_m, k_v, k_x2 = jax.random.split(key, 7)

    # small shapes consistent with the module (with_r=False)
    B, C, H, W = 2, 4, 16, 16
    Cout = 8
    Cin2 = C + 2

    x = jax.random.normal(k_x, (B, C, H, W), dtype=jnp.float32)
    w_conv = jax.random.normal(k_w, (Cout, Cin2, 1, 1), dtype=jnp.float32) * 0.1
    bn_gamma = 1.0 + 0.1 * jax.random.normal(k_g, (Cout,), dtype=jnp.float32)
    bn_beta = 0.1 * jax.random.normal(k_b, (Cout,), dtype=jnp.float32)
    bn_mean = 0.1 * jax.random.normal(k_m, (Cout,), dtype=jnp.float32)
    bn_var = jnp.abs(jax.random.normal(k_v, (Cout,), dtype=jnp.float32)) + 0.5

    out = coordconv_forward(x, w_conv, bn_gamma, bn_beta, bn_mean, bn_var)
    out = jax.block_until_ready(out)
    ref = _reference(x, w_conv, bn_gamma, bn_beta, bn_mean, bn_var)
    assert out.shape == (B, Cout, H, W)
    assert float(jnp.max(jnp.abs(out - ref))) < 5e-4

    # non-square map: catches any xx/yy orientation swap (H != W).
    H2, W2 = 8, 16
    x2 = jax.random.normal(k_x2, (B, C, H2, W2), dtype=jnp.float32)
    out2 = coordconv_forward(x2, w_conv, bn_gamma, bn_beta, bn_mean, bn_var)
    out2 = jax.block_until_ready(out2)
    ref2 = _reference(x2, w_conv, bn_gamma, bn_beta, bn_mean, bn_var)
    assert out2.shape == (B, Cout, H2, W2)
    assert float(jnp.max(jnp.abs(out2 - ref2))) < 5e-4

    print("KERNEL_OK")
</pallas_src>

<mosaic_0001>
module attributes {stable_mosaic.version = 11 : i64} {
  func.func @_coordconv_kernel_vpu(%arg0: i32, %arg1: i32, %arg2: memref<2x4x256xf32, #tpu.memory_space<vmem>>, %arg3: memref<2x256xf32, #tpu.memory_space<vmem>>, %arg4: memref<8x6xf32, #tpu.memory_space<vmem>>, %arg5: memref<8x1xf32, #tpu.memory_space<vmem>>, %arg6: memref<2x8x256xf32, #tpu.memory_space<vmem>>) attributes {dimension_semantics = [#tpu.dimension_semantics<parallel>, #tpu.dimension_semantics<parallel>], iteration_bounds = array<i64: 1, 1>, scalar_prefetch = 0 : i64, scratch_operands = 0 : i64, tpu.core_type = #tpu.core_type<tc>, window_params = [{transform_indices = @transform_0, window_bounds = array<i64: 2, 4, 256>}, {transform_indices = @transform_1, window_bounds = array<i64: 2, 256>}, {pipeline_mode = #tpu.pipeline_mode<synchronous>, transform_indices = @transform_2, window_bounds = array<i64: 8, 6>}, {pipeline_mode = #tpu.pipeline_mode<synchronous>, transform_indices = @transform_3, window_bounds = array<i64: 8, 1>}, {transform_indices = @transform_4, window_bounds = array<i64: 2, 8, 256>}]} {
    %c0 = arith.constant 0 : index
    %c0_0 = arith.constant 0 : index
    %0 = vector.load %arg4[%c0, %c0_0] : memref<8x6xf32, #tpu.memory_space<vmem>>, vector<8x6xf32>
    %c0_1 = arith.constant 0 : index
    %c0_2 = arith.constant 0 : index
    %1 = vector.load %arg3[%c0_1, %c0_2] : memref<2x256xf32, #tpu.memory_space<vmem>>, vector<2x256xf32>
    %2 = vector.extract_strided_slice %0 {offsets = [0, 4], sizes = [8, 1], strides = [1, 1]} : vector<8x6xf32> to vector<8x1xf32>
    %3 = vector.extract_strided_slice %1 {offsets = [0, 0], sizes = [1, 256], strides = [1, 1]} : vector<2x256xf32> to vector<1x256xf32>
    %4 = vector.broadcast %2 : vector<8x1xf32> to vector<8x256xf32>
    %5 = vector.broadcast %3 : vector<1x256xf32> to vector<8x256xf32>
    %6 = arith.mulf %4, %5 : vector<8x256xf32>
    %7 = vector.extract_strided_slice %0 {offsets = [0, 5], sizes = [8, 1], strides = [1, 1]} : vector<8x6xf32> to vector<8x1xf32>
    %8 = vector.extract_strided_slice %1 {offsets = [1, 0], sizes = [1, 256], strides = [1, 1]} : vector<2x256xf32> to vector<1x256xf32>
    %9 = vector.broadcast %7 : vector<8x1xf32> to vector<8x256xf32>
    %10 = vector.broadcast %8 : vector<1x256xf32> to vector<8x256xf32>
    %11 = arith.mulf %9, %10 : vector<8x256xf32>
    %12 = arith.addf %6, %11 : vector<8x256xf32>
    %c0_3 = arith.constant 0 : index
    %c0_4 = arith.constant 0 : index
    %13 = vector.load %arg5[%c0_3, %c0_4] : memref<8x1xf32, #tpu.memory_space<vmem>>, vector<8x1xf32>
    %14 = vector.broadcast %13 : vector<8x1xf32> to vector<8x256xf32>
    %15 = arith.addf %12, %14 : vector<8x256xf32>
    %c0_5 = arith.constant 0 : index
    %c0_6 = arith.constant 0 : index
    %c0_7 = arith.constant 0 : index
    %16 = vector.load %arg2[%c0_5, %c0_6, %c0_7] : memref<2x4x256xf32, #tpu.memory_space<vmem>>, vector<1x4x256xf32>
    %17 = vector.shape_cast %16 : vector<1x4x256xf32> to vector<4x256xf32>
    %18 = vector.extract_strided_slice %0 {offsets = [0, 0], sizes = [8, 1], strides = [1, 1]} : vector<8x6xf32> to vector<8x1xf32>
    %19 = vector.extract_strided_slice %17 {offsets = [0, 0], sizes = [1, 256], strides = [1, 1]} : vector<4x256xf32> to vector<1x256xf32>
    %20 = vector.broadcast %18 : vector<8x1xf32> to vector<8x256xf32>
    %21 = vector.broadcast %19 : vector<1x256xf32> to vector<8x256xf32>
    %22 = arith.mulf %20, %21 : vector<8x256xf32>
    %23 = arith.addf %15, %22 : vector<8x256xf32>
    %24 = vector.extract_strided_slice %0 {offsets = [0, 1], sizes = [8, 1], strides = [1, 1]} : vector<8x6xf32> to vector<8x1xf32>
    %25 = vector.extract_strided_slice %17 {offsets = [1, 0], sizes = [1, 256], strides = [1, 1]} : vector<4x256xf32> to vector<1x256xf32>
    %26 = vector.broadcast %24 : vector<8x1xf32> to vector<8x256xf32>
    %27 = vector.broadcast %25 : vector<1x256xf32> to vector<8x256xf32>
    %28 = arith.mulf %26, %27 : vector<8x256xf32>
    %29 = arith.addf %23, %28 : vector<8x256xf32>
    %30 = vector.extract_strided_slice %0 {offsets = [0, 2], sizes = [8, 1], strides = [1, 1]} : vector<8x6xf32> to vector<8x1xf32>
    %31 = vector.extract_strided_slice %17 {offsets = [2, 0], sizes = [1, 256], strides = [1, 1]} : vector<4x256xf32> to vector<1x256xf32>
    %32 = vector.broadcast %30 : vector<8x1xf32> to vector<8x256xf32>
    %33 = vector.broadcast %31 : vector<1x256xf32> to vector<8x256xf32>
    %34 = arith.mulf %32, %33 : vector<8x256xf32>
    %35 = arith.addf %29, %34 : vector<8x256xf32>
    %36 = vector.extract_strided_slice %0 {offsets = [0, 3], sizes = [8, 1], strides = [1, 1]} : vector<8x6xf32> to vector<8x1xf32>
    %37 = vector.extract_strided_slice %17 {offsets = [3, 0], sizes = [1, 256], strides = [1, 1]} : vector<4x256xf32> to vector<1x256xf32>
    %38 = vector.broadcast %36 : vector<8x1xf32> to vector<8x256xf32>
    %39 = vector.broadcast %37 : vector<1x256xf32> to vector<8x256xf32>
    %40 = arith.mulf %38, %39 : vector<8x256xf32>
    %41 = arith.addf %35, %40 : vector<8x256xf32>
    %cst = arith.constant 0.000000e+00 : f32
    %42 = vector.broadcast %cst : f32 to vector<8x256xf32>
    %43 = arith.subf %42, %41 : vector<8x256xf32>
    %cst_8 = arith.constant 8.000000e+01 : f32
    %44 = vector.broadcast %cst_8 : f32 to vector<8x256xf32>
    %45 = arith.minimumf %43, %44 : vector<8x256xf32>
    %46 = math.exp %45 : vector<8x256xf32>
    %cst_9 = arith.constant 1.000000e+00 : f32
    %47 = vector.broadcast %cst_9 : f32 to vector<8x256xf32>
    %48 = arith.addf %47, %46 : vector<8x256xf32>
    %49 = tpu.reciprocal %48 {approx = true} : vector<8x256xf32> -> vector<8x256xf32>
    %50 = arith.mulf %48, %49 : vector<8x256xf32>
    %cst_10 = arith.constant 2.000000e+00 : f32
    %51 = vector.broadcast %cst_10 : f32 to vector<8x256xf32>
    %52 = arith.subf %51, %50 : vector<8x256xf32>
    %53 = arith.mulf %49, %52 : vector<8x256xf32>
    %54 = arith.mulf %41, %53 : vector<8x256xf32>
    %c0_11 = arith.constant 0 : index
    %c0_12 = arith.constant 0 : index
    %c0_13 = arith.constant 0 : index
    %55 = vector.load %arg6[%c0_11, %c0_12, %c0_13] : memref<2x8x256xf32, #tpu.memory_space<vmem>>, vector<1x8x256xf32>
    %56 = vector.shape_cast %55 : vector<1x8x256xf32> to vector<8x256xf32>
    %57 = vector.shape_cast %54 : vector<8x256xf32> to vector<1x8x256xf32>
    tpu.vector_store %arg6[%c0_11, %c0_12, %c0_13], %57 {strides = array<i32>} : memref<2x8x256xf32, #tpu.memory_space<vmem>>, vector<1x8x256xf32>,
    %c1 = arith.constant 1 : index
    %c0_14 = arith.constant 0 : index
    %c0_15 = arith.constant 0 : index
    %58 = vector.load %arg2[%c1, %c0_14, %c0_15] : memref<2x4x256xf32, #tpu.memory_space<vmem>>, vector<1x4x256xf32>
    %59 = vector.shape_cast %58 : vector<1x4x256xf32> to vector<4x256xf32>
    %60 = vector.extract_strided_slice %0 {offsets = [0, 0], sizes = [8, 1], strides = [1, 1]} : vector<8x6xf32> to vector<8x1xf32>
    %61 = vector.extract_strided_slice %59 {offsets = [0, 0], sizes = [1, 256], strides = [1, 1]} : vector<4x256xf32> to vector<1x256xf32>
    %62 = vector.broadcast %60 : vector<8x1xf32> to vector<8x256xf32>
    %63 = vector.broadcast %61 : vector<1x256xf32> to vector<8x256xf32>
    %64 = arith.mulf %62, %63 : vector<8x256xf32>
    %65 = arith.addf %15, %64 : vector<8x256xf32>
    %66 = vector.extract_strided_slice %0 {offsets = [0, 1], sizes = [8, 1], strides = [1, 1]} : vector<8x6xf32> to vector<8x1xf32>
    %67 = vector.extract_strided_slice %59 {offsets = [1, 0], sizes = [1, 256], strides = [1, 1]} : vector<4x256xf32> to vector<1x256xf32>
    %68 = vector.broadcast %66 : vector<8x1xf32> to vector<8x256xf32>
    %69 = vector.broadcast %67 : vector<1x256xf32> to vector<8x256xf32>
    %70 = arith.mulf %68, %69 : vector<8x256xf32>
    %71 = arith.addf %65, %70 : vector<8x256xf32>
    %72 = vector.extract_strided_slice %0 {offsets = [0, 2], sizes = [8, 1], strides = [1, 1]} : vector<8x6xf32> to vector<8x1xf32>
    %73 = vector.extract_strided_slice %59 {offsets = [2, 0], sizes = [1, 256], strides = [1, 1]} : vector<4x256xf32> to vector<1x256xf32>
    %74 = vector.broadcast %72 : vector<8x1xf32> to vector<8x256xf32>
    %75 = vector.broadcast %73 : vector<1x256xf32> to vector<8x256xf32>
    %76 = arith.mulf %74, %75 : vector<8x256xf32>
    %77 = arith.addf %71, %76 : vector<8x256xf32>
    %78 = vector.extract_strided_slice %0 {offsets = [0, 3], sizes = [8, 1], strides = [1, 1]} : vector<8x6xf32> to vector<8x1xf32>
    %79 = vector.extract_strided_slice %59 {offsets = [3, 0], sizes = [1, 256], strides = [1, 1]} : vector<4x256xf32> to vector<1x256xf32>
    %80 = vector.broadcast %78 : vector<8x1xf32> to vector<8x256xf32>
    %81 = vector.broadcast %79 : vector<1x256xf32> to vector<8x256xf32>
    %82 = arith.mulf %80, %81 : vector<8x256xf32>
    %83 = arith.addf %77, %82 : vector<8x256xf32>
    %cst_16 = arith.constant 0.000000e+00 : f32
    %84 = vector.broadcast %cst_16 : f32 to vector<8x256xf32>
    %85 = arith.subf %84, %83 : vector<8x256xf32>
    %cst_17 = arith.constant 8.000000e+01 : f32
    %86 = vector.broadcast %cst_17 : f32 to vector<8x256xf32>
    %87 = arith.minimumf %85, %86 : vector<8x256xf32>
    %88 = math.exp %87 : vector<8x256xf32>
    %cst_18 = arith.constant 1.000000e+00 : f32
    %89 = vector.broadcast %cst_18 : f32 to vector<8x256xf32>
    %90 = arith.addf %89, %88 : vector<8x256xf32>
    %91 = tpu.reciprocal %90 {approx = true} : vector<8x256xf32> -> vector<8x256xf32>
    %92 = arith.mulf %90, %91 : vector<8x256xf32>
    %cst_19 = arith.constant 2.000000e+00 : f32
    %93 = vector.broadcast %cst_19 : f32 to vector<8x256xf32>
    %94 = arith.subf %93, %92 : vector<8x256xf32>
    %95 = arith.mulf %91, %94 : vector<8x256xf32>
    %96 = arith.mulf %83, %95 : vector<8x256xf32>
    %c1_20 = arith.constant 1 : index
    %c0_21 = arith.constant 0 : index
    %c0_22 = arith.constant 0 : index
    %97 = vector.load %arg6[%c1_20, %c0_21, %c0_22] : memref<2x8x256xf32, #tpu.memory_space<vmem>>, vector<1x8x256xf32>
    %98 = vector.shape_cast %97 : vector<1x8x256xf32> to vector<8x256xf32>
    %99 = vector.shape_cast %96 : vector<8x256xf32> to vector<1x8x256xf32>
    tpu.vector_store %arg6[%c1_20, %c0_21, %c0_22], %99 {strides = array<i32>} : memref<2x8x256xf32, #tpu.memory_space<vmem>>, vector<1x8x256xf32>,
    return
  }
  func.func @transform_0(%arg0: i32, %arg1: i32) -> (i32, i32, i32) {
    %c0_i32 = arith.constant 0 : i32
    %c0_i32_0 = arith.constant 0 : i32
    return %arg1, %c0_i32, %arg0 : i32, i32, i32
  }
  func.func @transform_1(%arg0: i32, %arg1: i32) -> (i32, i32) {
    %c0_i32 = arith.constant 0 : i32
    %c0_i32_0 = arith.constant 0 : i32
    return %c0_i32, %arg0 : i32, i32
  }
  func.func @transform_2(%arg0: i32, %arg1: i32) -> (i32, i32) {
    %c0_i32 = arith.constant 0 : i32
    %c0_i32_0 = arith.constant 0 : i32
    %c0_i32_1 = arith.constant 0 : i32
    return %c0_i32, %c0_i32_0 : i32, i32
  }
  func.func @transform_3(%arg0: i32, %arg1: i32) -> (i32, i32) {
    %c0_i32 = arith.constant 0 : i32
    %c0_i32_0 = arith.constant 0 : i32
    %c0_i32_1 = arith.constant 0 : i32
    return %c0_i32, %c0_i32_0 : i32, i32
  }
  func.func @transform_4(%arg0: i32, %arg1: i32) -> (i32, i32, i32) {
    %c0_i32 = arith.constant 0 : i32
    %c0_i32_0 = arith.constant 0 : i32
    return %arg1, %c0_i32, %arg0 : i32, i32, i32
  }
}

</mosaic_0001>

<llo_original>
// kernel: tpu_custom_call.1
$region0: #{tpu_custom_call.1}
  #allocation0 [shape = 'u32[]', space=smem, size = 0x4, offset = 0x4, fixed_abs, tag = 'smem constant byte address 0x4 - core index']
  #allocation1 [shape = 'u32[72,128]{1,0:T(1,128)}', space=vmem, size = 0x9000, scoped, tag = 'internal scratch']
  %s0 = inlined_call_operand.hbm [shape: f32[2,4,256], index: 0, kind: input, shape index: {}]
  %s1 = inlined_call_operand.hbm [shape: f32[2,256], index: 1, kind: input, shape index: {}]
  %s2 = inlined_call_operand.vmem [shape: f32[8,6], index: 2, kind: input, shape index: {}]
  %s3 = inlined_call_operand.vmem [shape: f32[8,1], index: 3, kind: input, shape index: {}]
  %s4 = inlined_call_operand.hbm [shape: f32[2,8,256], index: 4, kind: output, shape index: {}]
  %s5 = sld [smem:[#allocation0]]
  $region34: #{tpu_custom_call.1} parent=0
    _
  %s7 = ssub.s32 1, %s5
  %s8 = scalar_select 0, %s7, %s5
  $region1: #{tpu_custom_call.1} parent=0
    #allocation2 [shape = 'u8[8192]{0}', space=vmem, size = 0x2000, scoped, tag = 'input window, operand 0, single buffered']
    #allocation3 [shape = 's32[1]{0}', space=sflag, size = 0x4, scoped, tag = 'scoped memory for tpu_custom_call.1']
    #allocation4 [shape = 's32[1]{0}', space=sflag, size = 0x4, scoped, tag = 'scoped memory for tpu_custom_call.1']
    #allocation5 [shape = 'u8[2048]{0}', space=vmem, size = 0x800, scoped, tag = 'input window, operand 1, single buffered']
    #allocation6 [shape = 's32[1]{0}', space=sflag, size = 0x4, scoped, tag = 'scoped memory for tpu_custom_call.1']
    #allocation7 [shape = 'u8[16384]{0}', space=vmem, size = 0x4000, scoped, tag = 'output window, operand 0, single buffered']
    %9 = vsyncpa [#allocation3], 0
    %10 = vsyncpa [#allocation6], 0
    %11 = vsyncpa [#allocation4], 0
    // Predicated region
    $region2: #{tpu_custom_call.1} parent=1 // pred_check
      _
    $region3: #{tpu_custom_call.1} parent=1 // pred_check_branch
      %13 = sbr.rel (0) target = $region5
    $region4: #{tpu_custom_call.1} parent=1 // pred_region
      %15 = vsyncadd [#allocation3], 0
      %s16 = sshll.u32 %s0, 4
      %s17 = int_to_ptr.hbm [resolvable:$true] %s16
      %s18 = sshll.u32 [#allocation2], 4
      %s19 = int_to_ptr.vmem [resolvable:$true] %s18
      %24 = dma.hbm_to_vmem [thread:$0]  %s17, 256, %s19, [#allocation3], 128, 128, 8
    $region5: #{tpu_custom_call.1} parent=1 // pred_fallthru
      _
    // Predicated region
    $region6: #{tpu_custom_call.1} parent=1 // pred_check
      _
    $region7: #{tpu_custom_call.1} parent=1 // pred_check_branch
      %26 = sbr.rel (0) target = $region9
    $region8: #{tpu_custom_call.1} parent=1 // pred_region
      %28 = vsyncadd [#allocation6], 0
      %s30 = sshll.u32 %s1, 4
      %s31 = int_to_ptr.hbm [resolvable:$true] %s30
      %s32 = sshll.u32 [#allocation5], 4
      %s33 = int_to_ptr.vmem [resolvable:$true] %s32
      %35 = dma.hbm_to_vmem [thread:$0]  %s31, 64, %s33, [#allocation6]
    $region9: #{tpu_custom_call.1} parent=1 // pred_fallthru
      _
    // Predicated region
    $region10: #{tpu_custom_call.1} parent=1 // pred_check
      _
    $region11: #{tpu_custom_call.1} parent=1 // pred_check_branch
      %37 = sbr.rel (0) target = $region13
    $region12: #{tpu_custom_call.1} parent=1 // pred_region
      _
    $region13: #{tpu_custom_call.1} parent=1 // pred_fallthru
      _
    // Predicated region
    $region14: #{tpu_custom_call.1} parent=1 // pred_check
      _
    $region15: #{tpu_custom_call.1} parent=1 // pred_check_branch
      %39 = sbr.rel (0) target = $region17
    $region16: #{tpu_custom_call.1} parent=1 // pred_region
      _
    $region17: #{tpu_custom_call.1} parent=1 // pred_fallthru
      _
    // Predicated region
    $region18: #{tpu_custom_call.1} parent=1 // pred_check
      _
    $region19: #{tpu_custom_call.1} parent=1 // pred_check_branch
      %41 = sbr.rel (0) target = $region21
    $region20: #{tpu_custom_call.1} parent=1 // pred_region
      %43 = dma.done [#allocation3], 256
    $region21: #{tpu_custom_call.1} parent=1 // pred_fallthru
      _
    // Predicated region
    $region22: #{tpu_custom_call.1} parent=1 // pred_check
      _
    $region23: #{tpu_custom_call.1} parent=1 // pred_check_branch
      %45 = sbr.rel (0) target = $region25
    $region24: #{tpu_custom_call.1} parent=1 // pred_region
      %47 = dma.done [#allocation6], 64
    $region25: #{tpu_custom_call.1} parent=1 // pred_fallthru
      _
    %v48 = vld [vmem:[%s2] sm:$0xff]
    %v49 = vld [vmem:[#allocation5] sm:$0xf]
    %51 = vset.pattern.permute.xlu0 4
    %52 = vperm.xlu0 %51, %v48
    %v53 = vpop.permute.xlu0 %52
    %v56 = vperm.slane %v49, 0
    %v57 = vperm.slane %v49, 2
    %v60 = vperm.slane %v56, 0
    %v61 = vperm.slane %v57, 0
    %v62 = vmul.f32 %v53, %v60
    %v63 = vmul.f32 %v53, %v61
    %64 = vset.pattern.permute.xlu0 5
    %65 = vperm.xlu0 %64, %v48
    %v66 = vpop.permute.xlu0 %65
    %v68 = vperm.slane %v49, 1
    %v69 = vperm.slane %v49, 3
    %v72 = vperm.slane %v68, 1
    %v73 = vperm.slane %v69, 1
    %v74 = vmul.f32 %v66, %v72
    %v75 = vmul.f32 %v66, %v73
    %v76 = vadd.f32 %v62, %v74
    %v77 = vadd.f32 %v63, %v75
    %v78 = vld [vmem:[%s3] sm:$0xff]
    %80 = vset.pattern.permute.xlu0 0
    %81 = vperm.xlu0 %80, %v78
    %v82 = vpop.permute.xlu0 %81
    %v84 = vadd.f32 %v76, %v82
    %v85 = vadd.f32 %v77, %v82
    %v86 = vld [vmem:[#allocation2] sm:$0xff]
    %87 = vset.pattern.permute.xlu0 0
    %88 = vperm.xlu0 %87, %v48
    %v89 = vpop.permute.xlu0 %88
    %v92 = vperm.slane %v86, 0
    %v93 = vperm.slane %v86, 4
    %v96 = vperm.slane %v92, 0
    %v97 = vperm.slane %v93, 0
    %v98 = vmul.f32 %v89, %v96
    %v99 = vmul.f32 %v89, %v97
    %v100 = vadd.f32 %v84, %v98
    %v101 = vadd.f32 %v85, %v99
    %102 = vset.pattern.permute.xlu0 1
    %103 = vperm.xlu0 %102, %v48
    %v104 = vpop.permute.xlu0 %103
    %v106 = vperm.slane %v86, 1
    %v107 = vperm.slane %v86, 5
    %v110 = vperm.slane %v106, 1
    %v111 = vperm.slane %v107, 1
    %v112 = vmul.f32 %v104, %v110
    %v113 = vmul.f32 %v104, %v111
    %v114 = vadd.f32 %v100, %v112
    %v115 = vadd.f32 %v101, %v113
    %116 = vset.pattern.permute.xlu0 2
    %117 = vperm.xlu0 %116, %v48
    %v118 = vpop.permute.xlu0 %117
    %v120 = vperm.slane %v86, 2
    %v121 = vperm.slane %v86, 6
    %v124 = vperm.slane %v120, 2
    %v125 = vperm.slane %v121, 2
    %v126 = vmul.f32 %v118, %v124
    %v127 = vmul.f32 %v118, %v125
    %v128 = vadd.f32 %v114, %v126
    %v129 = vadd.f32 %v115, %v127
    %130 = vset.pattern.permute.xlu0 3
    %131 = vperm.xlu0 %130, %v48
    %v132 = vpop.permute.xlu0 %131
    %v134 = vperm.slane %v86, 3
    %v135 = vperm.slane %v86, 7
    %v138 = vperm.slane %v134, 3
    %v139 = vperm.slane %v135, 3
    %v140 = vmul.f32 %v132, %v138
    %v141 = vmul.f32 %v132, %v139
    %v142 = vadd.f32 %v128, %v140
    %v143 = vadd.f32 %v129, %v141
    %v144 = vsub.f32 0.0, %v142
    %v145 = vsub.f32 0.0, %v143
    %v146 = vmin.f32 %v144, 80.0
    %v147 = vmin.f32 %v145, 80.0
    %v148 = vmul.f32 %v146, 1.442695
    %v149 = vpow.pop %v148
    %v150 = vmul.f32 %v147, 1.442695
    %v151 = vpow.pop %v150
    %v152 = vadd.f32 %v149, 1.0
    %v153 = vadd.f32 %v151, 1.0
    %v154 = vrcp.pop %v152
    %v155 = vrcp.pop %v153
    %v156 = vmul.f32 %v152, %v154
    %v157 = vmul.f32 %v153, %v155
    %v158 = vsub.f32 2.0, %v156
    %v159 = vsub.f32 2.0, %v157
    %v160 = vmul.f32 %v154, %v158
    %v161 = vmul.f32 %v155, %v159
    %v162 = vmul.f32 %v142, %v160
    %v163 = vmul.f32 %v143, %v161
    %164 = vst [vmem:[#allocation7] sm:$0xff] %v162
    %165 = vst [vmem:[#allocation7 + $0x8] sm:$0xff] %v163
    %s166 = scalar_lea.vmem [#allocation2], 8
    %v167 = vld [vmem:[%s166] sm:$0xff]
    %v169 = vperm.slane %v167, 0
    %v170 = vperm.slane %v167, 4
    %v173 = vperm.slane %v169, 0
    %v174 = vperm.slane %v170, 0
    %v175 = vmul.f32 %v89, %v173
    %v176 = vmul.f32 %v89, %v174
    %v177 = vadd.f32 %v84, %v175
    %v178 = vadd.f32 %v85, %v176
    %v179 = vperm.slane %v167, 1
    %v180 = vperm.slane %v167, 5
    %v183 = vperm.slane %v179, 1
    %v184 = vperm.slane %v180, 1
    %v185 = vmul.f32 %v104, %v183
    %v186 = vmul.f32 %v104, %v184
    %v187 = vadd.f32 %v177, %v185
    %v188 = vadd.f32 %v178, %v186
    %v189 = vperm.slane %v167, 2
    %v190 = vperm.slane %v167, 6
    %v193 = vperm.slane %v189, 2
    %v194 = vperm.slane %v190, 2
    %v195 = vmul.f32 %v118, %v193
    %v196 = vmul.f32 %v118, %v194
    %v197 = vadd.f32 %v187, %v195
    %v198 = vadd.f32 %v188, %v196
    %v199 = vperm.slane %v167, 3
    %v200 = vperm.slane %v167, 7
    %v203 = vperm.slane %v199, 3
    %v204 = vperm.slane %v200, 3
    %v205 = vmul.f32 %v132, %v203
    %v206 = vmul.f32 %v132, %v204
    %v207 = vadd.f32 %v197, %v205
    %v208 = vadd.f32 %v198, %v206
    %v209 = vsub.f32 0.0, %v207
    %v210 = vsub.f32 0.0, %v208
    %v211 = vmin.f32 %v209, 80.0
    %v212 = vmin.f32 %v210, 80.0
    %v213 = vmul.f32 %v211, 1.442695
    %v214 = vpow.pop %v213
    %v215 = vmul.f32 %v212, 1.442695
    %v216 = vpow.pop %v215
    %v217 = vadd.f32 %v214, 1.0
    %v218 = vadd.f32 %v216, 1.0
    %v219 = vrcp.pop %v217
    %v220 = vrcp.pop %v218
    %v221 = vmul.f32 %v217, %v219
    %v222 = vmul.f32 %v218, %v220
    %v223 = vsub.f32 2.0, %v221
    %v224 = vsub.f32 2.0, %v222
    %v225 = vmul.f32 %v219, %v223
    %v226 = vmul.f32 %v220, %v224
    %v227 = vmul.f32 %v207, %v225
    %v228 = vmul.f32 %v208, %v226
    %s229 = scalar_lea.vmem [#allocation7], 16
    %230 = vst [vmem:[%s229] sm:$0xff] %v227
    %231 = vst [vmem:[%s229 + $0x8] sm:$0xff] %v228
    // Predicated region
    $region26: #{tpu_custom_call.1} parent=1 // pred_check
      _
    $region27: #{tpu_custom_call.1} parent=1 // pred_check_branch
      %233 = sbr.rel (0) target = $region29
    $region28: #{tpu_custom_call.1} parent=1 // pred_region
      %235 = vsyncadd [#allocation4], 0
      %s236 = sshll.u32 [#allocation7], 4
      %s237 = int_to_ptr.vmem [resolvable:$true] %s236
      %s238 = sshll.u32 %s4, 4
      %s239 = int_to_ptr.hbm [resolvable:$true] %s238
      %244 = dma.vmem_to_hbm [thread:$0]  %s237, 512, %s239, [#allocation4], 256, 256, 16
    $region29: #{tpu_custom_call.1} parent=1 // pred_fallthru
      _
    // Predicated region
    $region30: #{tpu_custom_call.1} parent=1 // pred_check
      _
    $region31: #{tpu_custom_call.1} parent=1 // pred_check_branch
      %246 = sbr.rel (0) target = $region33
    $region32: #{tpu_custom_call.1} parent=1 // pred_region
      %248 = dma.done [#allocation4], 512
    $region33: #{tpu_custom_call.1} parent=1 // pred_fallthru
      _
    %249 = vsyncpa [#allocation3], 1
    %250 = vsyncpa [#allocation6], 1
    %251 = vsyncpa [#allocation4], 1

</llo_original>
